<compile_context>
chip_gen: v6e
topology: v6e:2x2x1
jax: 0.10.0
libtpu: 0.0.40
codegen_flags: <defaults>
</compile_context>

<pallas_src>
import jax
import jax.numpy as jnp
from jax.experimental import pallas as pl
from jax.experimental.pallas import tpu as pltpu


def _elementwise_affine_kernel(x_ref, mask_ref, m_ref, scale_ref, y_ref):
    # x_ref: (Bb, Ct, Tt), mask_ref: (Bb, 1, Tt), m/scale: (1, Ct, 1) f32.
    x = x_ref[...].astype(jnp.float32)
    mask = mask_ref[...].astype(jnp.float32)
    y = (m_ref[...] + scale_ref[...] * x) * mask
    y_ref[...] = y.astype(y_ref.dtype)


def _choose_tiles(B, C, T, x_itemsize, mask_itemsize):
    """Pick (Bb, Ct, Tt, vmem_limit_bytes) from shape + chip VMEM capacity."""
    try:
        vmem_bytes = int(getattr(pltpu.get_tpu_info(), "vmem_capacity_bytes",
                                 64 * 1024 * 1024))
    except Exception:
        vmem_bytes = 64 * 1024 * 1024  # conservative: v7x per-TC VMEM

    # Budget for a single (Bb, Ct, Tt) x/y block in its native dtype.
    per_buffer_budget = min(8 << 20, max(2 << 20, vmem_bytes // 16))
    max_tile = 4096  # lanes

    # --- channel tile: full C when it fits, otherwise a multiple of 8 -------
    if C <= 8 or C * x_itemsize * 128 <= per_buffer_budget:
        c_tile = C
    else:
        c_tile = max(8, (per_buffer_budget // (x_itemsize * 128) // 8) * 8)
        c_tile = min(c_tile, (C // 8) * 8)

    # --- batch block: pack small-C models so rows/step fill a sublane group --
    target_rows = 8 if x_itemsize >= 4 else 16
    bb = min(B, max(1, -(-target_rows // max(1, c_tile))))

    # --- time tile: lane-dense (multiple of 128) within the budget ----------
    t_cap = max(128, (per_buffer_budget // max(1, bb * c_tile * x_itemsize)
                      // 128) * 128)
    t_cap = min(t_cap, max_tile)
    t_tile = T if T <= t_cap else t_cap  # full extent => exact, no tail block

    # --- megacore balance: only matters on 2-TC chips (v7x, ~64 MiB/TC) -----
    multi_core = vmem_bytes < (100 << 20)
    min_parallel = 4 if multi_core else 1

    def steps(tt):
        return (-(-B // bb)) * (-(-C // c_tile)) * (-(-T // tt))

    while steps(t_tile) < min_parallel and t_tile >= 512:
        t_tile = max(256, ((t_tile // 2) // 128) * 128)

    # --- scoped VMEM limit from the actual double-buffered footprint --------
    x_blk = bb * c_tile * t_tile * x_itemsize
    y_blk = x_blk
    mask_blk = bb * t_tile * mask_itemsize
    params = 2 * (c_tile * 4)
    footprint = 2 * (x_blk + y_blk + mask_blk) + 2 * params
    vmem_limit = int(min(max(2 * footprint + (4 << 20), 16 << 20),
                         (3 * vmem_bytes) // 4))
    return bb, c_tile, t_tile, vmem_limit


def elementwise_affine_forward(x, x_mask, m, logs):
    """Pallas forward pass. Returns (y, logdet) with y: (B,C,T), logdet: (B,)."""
    B, C, T = x.shape
    assert x_mask.shape == (B, 1, T)
    assert m.shape == (C, 1) and logs.shape == (C, 1)

    # Precompute params once (the grid would otherwise re-emit exp/broadcast).
    m_f32 = m.astype(jnp.float32).reshape(1, C, 1)
    scale_f32 = jnp.exp(logs.astype(jnp.float32)).reshape(1, C, 1)

    bb, c_tile, t_tile, vmem_limit = _choose_tiles(
        B, C, T, x.dtype.itemsize, x_mask.dtype.itemsize
    )
    grid = (pl.cdiv(B, bb), pl.cdiv(C, c_tile), pl.cdiv(T, t_tile))

    y = pl.pallas_call(
        _elementwise_affine_kernel,
        out_shape=jax.ShapeDtypeStruct((B, C, T), x.dtype),
        grid=grid,
        in_specs=[
            pl.BlockSpec((bb, c_tile, t_tile), lambda b, c, t: (b, c, t)),
            pl.BlockSpec((bb, 1, t_tile), lambda b, c, t: (b, 0, t)),
            pl.BlockSpec((1, c_tile, 1), lambda b, c, t: (0, c, 0)),
            pl.BlockSpec((1, c_tile, 1), lambda b, c, t: (0, c, 0)),
        ],
        out_specs=pl.BlockSpec((bb, c_tile, t_tile), lambda b, c, t: (b, c, t)),
        compiler_params=pltpu.CompilerParams(
            dimension_semantics=("parallel", "parallel", "parallel"),
            vmem_limit_bytes=vmem_limit,
        ),
    )(x, x_mask, m_f32, scale_f32)

    # logdet hoisted out of the kernel (exact): sum_{c,t} logs[c] * mask[b,0,t]
    #   = sum(logs) * sum_t mask[b,0,t]  -- O(C + B*T), no (B,C,T) broadcast.
    logdet = jnp.sum(logs.astype(jnp.float32)) * jnp.sum(
        x_mask.astype(jnp.float32), axis=(1, 2)
    )
    return y, logdet


def elementwise_affine_reference(x, x_mask, m, logs):
    """Pure-JAX reference, mirrors the PyTorch forward (reverse=False)."""
    y = (m[None] + jnp.exp(logs)[None] * x) * x_mask
    logdet = jnp.sum(logs[None] * x_mask, axis=(1, 2))
    return y, logdet


if __name__ == "__main__":
    key = jax.random.PRNGKey(0)
    k_x, k_m, k_s, k_x2 = jax.random.split(key, 4)

    # --- small shape (matches the module's toy test) ------------------------
    B, C, T = 2, 4, 16
    x = jax.random.normal(k_x, (B, C, T), dtype=jnp.float32)
    m = 0.1 * jax.random.normal(k_m, (C, 1), dtype=jnp.float32)
    logs = 0.1 * jax.random.normal(k_s, (C, 1), dtype=jnp.float32)
    lengths = jnp.array([T, T - 5], dtype=jnp.int32)
    x_mask = (jnp.arange(T)[None, None, :] < lengths[:, None, None]).astype(jnp.float32)

    y, logdet = elementwise_affine_forward(x, x_mask, m, logs)
    jax.block_until_ready((y, logdet))
    y_ref, logdet_ref = elementwise_affine_reference(x, x_mask, m, logs)
    assert jnp.allclose(y, y_ref, atol=1e-5, rtol=1e-5)
    assert jnp.allclose(logdet, logdet_ref, atol=1e-5, rtol=1e-5)

    # --- non-multiple-of-128 T to exercise the cdiv grid / ragged path ------
    B2, C2, T2 = 2, 8, 300
    x2 = jax.random.normal(k_x2, (B2, C2, T2), dtype=jnp.float32)
    m2 = 0.1 * jax.random.normal(k_m, (C2, 1), dtype=jnp.float32)
    logs2 = 0.1 * jax.random.normal(k_s, (C2, 1), dtype=jnp.float32)
    lengths2 = jnp.array([T2, T2 - 77], dtype=jnp.int32)
    x_mask2 = (jnp.arange(T2)[None, None, :] < lengths2[:, None, None]).astype(jnp.float32)

    y2, logdet2 = elementwise_affine_forward(x2, x_mask2, m2, logs2)
    jax.block_until_ready((y2, logdet2))
    y2_ref, logdet2_ref = elementwise_affine_reference(x2, x_mask2, m2, logs2)
    assert jnp.allclose(y2, y2_ref, atol=1e-5, rtol=1e-5)
    assert jnp.allclose(logdet2, logdet2_ref, atol=1e-5, rtol=1e-5)

    print("KERNEL_OK")
</pallas_src>

<mosaic_0001>
module attributes {stable_mosaic.version = 11 : i64} {
  func.func @_elementwise_affine_kernel(%arg0: i32, %arg1: i32, %arg2: i32, %arg3: memref<2x4x16xf32, #tpu.memory_space<vmem>>, %arg4: memref<2x1x16xf32, #tpu.memory_space<vmem>>, %arg5: memref<1x4x1xf32, #tpu.memory_space<vmem>>, %arg6: memref<1x4x1xf32, #tpu.memory_space<vmem>>, %arg7: memref<2x4x16xf32, #tpu.memory_space<vmem>>) attributes {dimension_semantics = [#tpu.dimension_semantics<parallel>, #tpu.dimension_semantics<parallel>, #tpu.dimension_semantics<parallel>], iteration_bounds = array<i64: 1, 1, 1>, scalar_prefetch = 0 : i64, scratch_operands = 0 : i64, tpu.core_type = #tpu.core_type<tc>, window_params = [{transform_indices = @transform_0, window_bounds = array<i64: 2, 4, 16>}, {transform_indices = @transform_1, window_bounds = array<i64: 2, 1, 16>}, {transform_indices = @transform_2, window_bounds = array<i64: 1, 4, 1>}, {transform_indices = @transform_3, window_bounds = array<i64: 1, 4, 1>}, {transform_indices = @transform_4, window_bounds = array<i64: 2, 4, 16>}]} {
    %c0 = arith.constant 0 : index
    %c0_0 = arith.constant 0 : index
    %c0_1 = arith.constant 0 : index
    %0 = vector.load %arg3[%c0, %c0_0, %c0_1] : memref<2x4x16xf32, #tpu.memory_space<vmem>>, vector<2x4x16xf32>
    %c0_2 = arith.constant 0 : index
    %c0_3 = arith.constant 0 : index
    %c0_4 = arith.constant 0 : index
    %1 = vector.load %arg4[%c0_2, %c0_3, %c0_4] : memref<2x1x16xf32, #tpu.memory_space<vmem>>, vector<2x1x16xf32>
    %c0_5 = arith.constant 0 : index
    %c0_6 = arith.constant 0 : index
    %c0_7 = arith.constant 0 : index
    %2 = vector.load %arg5[%c0_5, %c0_6, %c0_7] : memref<1x4x1xf32, #tpu.memory_space<vmem>>, vector<1x4x1xf32>
    %c0_8 = arith.constant 0 : index
    %c0_9 = arith.constant 0 : index
    %c0_10 = arith.constant 0 : index
    %3 = vector.load %arg6[%c0_8, %c0_9, %c0_10] : memref<1x4x1xf32, #tpu.memory_space<vmem>>, vector<1x4x1xf32>
    %4 = vector.broadcast %3 : vector<1x4x1xf32> to vector<2x4x16xf32>
    %5 = arith.mulf %4, %0 : vector<2x4x16xf32>
    %6 = vector.broadcast %2 : vector<1x4x1xf32> to vector<2x4x16xf32>
    %7 = arith.addf %6, %5 : vector<2x4x16xf32>
    %8 = vector.broadcast %1 : vector<2x1x16xf32> to vector<2x4x16xf32>
    %9 = arith.mulf %7, %8 : vector<2x4x16xf32>
    %c0_11 = arith.constant 0 : index
    %c0_12 = arith.constant 0 : index
    %c0_13 = arith.constant 0 : index
    %10 = vector.load %arg7[%c0_11, %c0_12, %c0_13] : memref<2x4x16xf32, #tpu.memory_space<vmem>>, vector<2x4x16xf32>
    tpu.vector_store %arg7[%c0_11, %c0_12, %c0_13], %9 {strides = array<i32>} : memref<2x4x16xf32, #tpu.memory_space<vmem>>, vector<2x4x16xf32>,
    return
  }
  func.func @transform_0(%arg0: i32, %arg1: i32, %arg2: i32) -> (i32, i32, i32) {
    %c0_i32 = arith.constant 0 : i32
    return %arg0, %arg1, %arg2 : i32, i32, i32
  }
  func.func @transform_1(%arg0: i32, %arg1: i32, %arg2: i32) -> (i32, i32, i32) {
    %c0_i32 = arith.constant 0 : i32
    %c0_i32_0 = arith.constant 0 : i32
    return %arg0, %c0_i32, %arg2 : i32, i32, i32
  }
  func.func @transform_2(%arg0: i32, %arg1: i32, %arg2: i32) -> (i32, i32, i32) {
    %c0_i32 = arith.constant 0 : i32
    %c0_i32_0 = arith.constant 0 : i32
    %c0_i32_1 = arith.constant 0 : i32
    return %c0_i32, %arg1, %c0_i32_0 : i32, i32, i32
  }
  func.func @transform_3(%arg0: i32, %arg1: i32, %arg2: i32) -> (i32, i32, i32) {
    %c0_i32 = arith.constant 0 : i32
    %c0_i32_0 = arith.constant 0 : i32
    %c0_i32_1 = arith.constant 0 : i32
    return %c0_i32, %arg1, %c0_i32_0 : i32, i32, i32
  }
  func.func @transform_4(%arg0: i32, %arg1: i32, %arg2: i32) -> (i32, i32, i32) {
    %c0_i32 = arith.constant 0 : i32
    return %arg0, %arg1, %arg2 : i32, i32, i32
  }
}

</mosaic_0001>

<llo_original>
// kernel: tpu_custom_call.1
$region0: #{tpu_custom_call.1}
  #allocation0 [shape = 'u32[]', space=smem, size = 0x4, offset = 0x4, fixed_abs, tag = 'smem constant byte address 0x4 - core index']
  #allocation1 [shape = 'u32[144,128]{1,0:T(1,128)}', space=vmem, size = 0x12000, scoped, tag = 'internal scratch']
  %s0 = inlined_call_operand.vmem [shape: f32[2,4,16], index: 0, kind: input, shape index: {}]
  %s1 = inlined_call_operand.vmem [shape: f32[2,1,16], index: 1, kind: input, shape index: {}]
  %s2 = inlined_call_operand.vmem [shape: f32[1,4,1], index: 2, kind: input, shape index: {}]
  %s3 = inlined_call_operand.vmem [shape: f32[1,4,1], index: 3, kind: input, shape index: {}]
  %s4 = inlined_call_operand.hbm [shape: f32[2,4,16], index: 4, kind: output, shape index: {}]
  %s5 = sld [smem:[#allocation0]]
  $region26: #{tpu_custom_call.1} parent=0
    _
  %s7 = ssub.s32 1, %s5
  %s8 = scalar_select 0, %s7, %s5
  $region1: #{tpu_custom_call.1} parent=0
    #allocation2 [shape = 'u8[4096]{0}', space=vmem, size = 0x1000, scoped, tag = 'output window, operand 0, single buffered']
    #allocation3 [shape = 's32[1]{0}', space=sflag, size = 0x4, scoped, tag = 'scoped memory for tpu_custom_call.1']
    %9 = vsyncpa [#allocation3], 0
    // Predicated region
    $region2: #{tpu_custom_call.1} parent=1 // pred_check
      _
    $region3: #{tpu_custom_call.1} parent=1 // pred_check_branch
      %11 = sbr.rel (0) target = $region5
    $region4: #{tpu_custom_call.1} parent=1 // pred_region
      _
    $region5: #{tpu_custom_call.1} parent=1 // pred_fallthru
      _
    // Predicated region
    $region6: #{tpu_custom_call.1} parent=1 // pred_check
      _
    $region7: #{tpu_custom_call.1} parent=1 // pred_check_branch
      %13 = sbr.rel (0) target = $region9
    $region8: #{tpu_custom_call.1} parent=1 // pred_region
      _
    $region9: #{tpu_custom_call.1} parent=1 // pred_fallthru
      _
    // Predicated region
    $region10: #{tpu_custom_call.1} parent=1 // pred_check
      _
    $region11: #{tpu_custom_call.1} parent=1 // pred_check_branch
      %15 = sbr.rel (0) target = $region13
    $region12: #{tpu_custom_call.1} parent=1 // pred_region
      _
    $region13: #{tpu_custom_call.1} parent=1 // pred_fallthru
      _
    // Predicated region
    $region14: #{tpu_custom_call.1} parent=1 // pred_check
      _
    $region15: #{tpu_custom_call.1} parent=1 // pred_check_branch
      %17 = sbr.rel (0) target = $region17
    $region16: #{tpu_custom_call.1} parent=1 // pred_region
      _
    $region17: #{tpu_custom_call.1} parent=1 // pred_fallthru
      _
    %v18 = vld [vmem:[%s0] sm:$0xf]
    %v19 = vld [vmem:[%s0 + $0x4] sm:$0xf]
    %v20 = vld [vmem:[%s1] sm:$0x1]
    %v21 = vld [vmem:[%s1 + $0x1] sm:$0x1]
    %v22 = vld [vmem:[%s2] sm:$0xf]
    %v23 = vld [vmem:[%s3] sm:$0xf]
    %25 = vset.pattern.permute.xlu0 0
    %26 = vperm.xlu0 %25, %v23
    %v27 = vpop.permute.xlu0 %26
    %v29 = vmul.f32 %v27, %v18
    %v30 = vmul.f32 %v27, %v19
    %32 = vset.pattern.permute.xlu0 0
    %33 = vperm.xlu0 %32, %v22
    %v34 = vpop.permute.xlu0 %33
    %v36 = vadd.f32 %v34, %v29
    %v37 = vadd.f32 %v34, %v30
    %v40 = vlaneseq
    %v41 = vshrl.u32 %v40, 7
    %v42 = vsub.s32 0, %v41
    %v43 = vrot.slane %v20, %v42
    %v44 = vlaneseq
    %v45 = vshrl.u32 %v44, 7
    %v46 = vsub.s32 0, %v45
    %v47 = vrot.slane %v21, %v46
    %v50 = vmul.f32 %v36, %v43
    %v51 = vmul.f32 %v37, %v47
    %vm52 = vcmask 125952
    %53 = vst.msk [vmem:[#allocation2] sm:$0xf] %vm52, %v50
    %54 = vst.msk [vmem:[#allocation2 + $0x4] sm:$0xf] %vm52, %v51
    // Predicated region
    $region18: #{tpu_custom_call.1} parent=1 // pred_check
      _
    $region19: #{tpu_custom_call.1} parent=1 // pred_check_branch
      %56 = sbr.rel (0) target = $region21
    $region20: #{tpu_custom_call.1} parent=1 // pred_region
      %s58 = ssub.s32 128, 128
      %59 = vsyncadd [#allocation3], %s58
      %s60 = sshll.u32 [#allocation2], 4
      %s61 = int_to_ptr.vmem [resolvable:$true] %s60
      %66 = dma.vmem_to_hbm [thread:$0]  %s61, 128, %s4, [#allocation3], 64, 64, 4
    $region21: #{tpu_custom_call.1} parent=1 // pred_fallthru
      _
    // Predicated region
    $region22: #{tpu_custom_call.1} parent=1 // pred_check
      _
    $region23: #{tpu_custom_call.1} parent=1 // pred_check_branch
      %68 = sbr.rel (0) target = $region25
    $region24: #{tpu_custom_call.1} parent=1 // pred_region
      %69 = dma.done [#allocation3], 128
    $region25: #{tpu_custom_call.1} parent=1 // pred_fallthru
      _
    %70 = vsyncpa [#allocation3], 1

</llo_original>
